<compile_context>
chip_gen: v7x
topology: tpu7x:2x2x1
jax: 0.10.0
libtpu: 0.0.40
codegen_flags: <defaults>
</compile_context>

<pallas_src>
import jax
import jax.numpy as jnp
from jax.experimental import pallas as pl
from jax.experimental.pallas import tpu as pltpu


def _seq_crit_kernel(lp_ref, tgt_ref, mask_ref, out_ref):
    # lp_ref:   (TR, TV) logprobs tile, native dtype (f32 or bf16)
    # tgt_ref:  (TR, 1)  int32  targets  (V-tile independent)
    # mask_ref: (TR, 1)  f32    mask     (V-tile independent)
    # out_ref:  (TR, 1)  f32    per-row partial numerator, resident across V axis
    j = pl.program_id(1)

    @pl.when(j == 0)
    def _init():
        out_ref[...] = jnp.zeros_like(out_ref)

    lp = lp_ref[...]                                            # (TR, TV)
    tv = lp.shape[1]
    # Global vocab index of each lane in this tile.
    lane = jax.lax.broadcasted_iota(jnp.int32, lp.shape, 1) + j * tv
    # where-select instead of onehot-multiply: padded / OOB lanes never match
    # (target < V), so garbage in padded lanes cannot propagate.
    sel = jnp.where(lane == tgt_ref[...], lp, jnp.zeros_like(lp))
    picked = jnp.sum(sel.astype(jnp.float32), axis=-1, keepdims=True)  # (TR, 1)
    out_ref[...] += -picked * mask_ref[...]


def seq_model_criterion(logprobs, target, mask, *, tr=256, tv=2048):
    """Masked sequence NLL loss (scalar). logprobs stream in their native dtype."""
    n, L, V = logprobs.shape
    assert target.shape == (n, L) and mask.shape == (n, L)
    rows = n * L

    lp2 = logprobs.reshape(rows, V)                    # no dtype up-cast (free view)
    tgt2 = target.reshape(rows, 1).astype(jnp.int32)   # tiny
    mask2 = mask.reshape(rows, 1).astype(jnp.float32)  # tiny

    # Tile clamping: a block dim equal to the full array dim is always legal;
    # otherwise keep multiples of (8, 128) and let Pallas mask partial blocks.
    tr = rows if rows <= tr else tr
    tv = V if V <= tv else tv

    grid = (pl.cdiv(rows, tr), pl.cdiv(V, tv))

    partial_num = pl.pallas_call(
        _seq_crit_kernel,
        out_shape=jax.ShapeDtypeStruct((rows, 1), jnp.float32),
        grid_spec=pltpu.PrefetchScalarGridSpec(
            num_scalar_prefetch=0,
            grid=grid,
            in_specs=[
                pl.BlockSpec((tr, tv), lambda i, j: (i, j)),   # logprobs tile
                pl.BlockSpec((tr, 1), lambda i, j: (i, 0)),    # target (V-independent)
                pl.BlockSpec((tr, 1), lambda i, j: (i, 0)),    # mask   (V-independent)
            ],
            out_specs=pl.BlockSpec((tr, 1), lambda i, j: (i, 0)),
        ),
        compiler_params=pltpu.CompilerParams(
            dimension_semantics=("parallel", "arbitrary"),
            vmem_limit_bytes=32 * 1024 * 1024,
        ),
    )(lp2, tgt2, mask2)

    num = jnp.sum(partial_num)
    den = jnp.sum(mask2) + jnp.float32(1e-6)
    return num / den


def _reference(logprobs, target, mask):
    # Pure-JAX reference mirroring the PyTorch module.
    picked = jnp.take_along_axis(logprobs, target[:, :, None], axis=2)[:, :, 0]
    out = -picked * mask
    return jnp.sum(out) / (jnp.sum(mask) + 1e-6)


if __name__ == "__main__":
    key = jax.random.PRNGKey(0)

    # --- test 1: module-scale shapes (single tile) -------------------------
    n, L, V = 2, 8, 32
    k1, k2, k3 = jax.random.split(key, 3)
    logits = jax.random.normal(k1, (n, L, V), dtype=jnp.float32)
    logprobs = jax.nn.log_softmax(logits, axis=-1)
    target = jax.random.randint(k2, (n, L), 0, V, dtype=jnp.int32)
    mask = (jax.random.uniform(k3, (n, L)) > 0.3).astype(jnp.float32)

    loss = seq_model_criterion(logprobs, target, mask)
    jax.block_until_ready(loss)
    ref = _reference(logprobs, target, mask)
    assert jnp.allclose(loss, ref, atol=1e-5, rtol=1e-5), (loss, ref)

    # --- test 2: small shapes forced onto a multi-tile grid (exercises the
    #             accumulator init / V-axis reduction / row-parallel path) ---
    n2, L2, V2 = 2, 16, 256
    k4, k5, k6 = jax.random.split(jax.random.PRNGKey(1), 3)
    lp_b = jax.nn.log_softmax(jax.random.normal(k4, (n2, L2, V2), jnp.float32), -1)
    tgt_b = jax.random.randint(k5, (n2, L2), 0, V2, dtype=jnp.int32)
    msk_b = (jax.random.uniform(k6, (n2, L2)) > 0.5).astype(jnp.float32)

    loss_b = seq_model_criterion(lp_b, tgt_b, msk_b, tr=8, tv=128)  # grid (4, 2)
    jax.block_until_ready(loss_b)
    ref_b = _reference(lp_b, tgt_b, msk_b)
    assert jnp.allclose(loss_b, ref_b, atol=1e-5, rtol=1e-5), (loss_b, ref_b)

    # --- test 3: bf16 logprobs stream without any wrapper up-cast -----------
    lp_bf16 = lp_b.astype(jnp.bfloat16)
    loss_c = seq_model_criterion(lp_bf16, tgt_b, msk_b, tr=8, tv=128)
    jax.block_until_ready(loss_c)
    ref_c = _reference(lp_bf16.astype(jnp.float32), tgt_b, msk_b)
    assert jnp.allclose(loss_c, ref_c, atol=1e-5, rtol=1e-5), (loss_c, ref_c)

    print("KERNEL_OK")
</pallas_src>

<mosaic_0001>
module attributes {stable_mosaic.version = 11 : i64} {
  func.func @_seq_crit_kernel(%arg0: i32, %arg1: i32, %arg2: memref<16x32xf32, #tpu.memory_space<vmem>>, %arg3: memref<16x1xi32, #tpu.memory_space<vmem>>, %arg4: memref<16x1xf32, #tpu.memory_space<vmem>>, %arg5: memref<16x1xf32, #tpu.memory_space<vmem>>) attributes {dimension_semantics = [#tpu.dimension_semantics<parallel>, #tpu.dimension_semantics<arbitrary>], iteration_bounds = array<i64: 1, 1>, scalar_prefetch = 0 : i64, scratch_operands = 0 : i64, tpu.core_type = #tpu.core_type<tc>, window_params = [{transform_indices = @transform_0, window_bounds = array<i64: 16, 32>}, {transform_indices = @transform_1, window_bounds = array<i64: 16, 1>}, {transform_indices = @transform_2, window_bounds = array<i64: 16, 1>}, {transform_indices = @transform_3, window_bounds = array<i64: 16, 1>}]} {
    %c0_i32 = arith.constant 0 : i32
    %0 = arith.cmpi eq, %arg1, %c0_i32 : i32
    %1 = arith.extui %0 : i1 to i32
    %c0_i32_0 = arith.constant 0 : i32
    %2 = arith.cmpi ne, %1, %c0_i32_0 : i32
    scf.if %2 {
      %cst_12 = arith.constant 0.000000e+00 : f32
      %22 = vector.broadcast %cst_12 : f32 to vector<16x1xf32>
      %c0_13 = arith.constant 0 : index
      %c0_14 = arith.constant 0 : index
      %23 = vector.load %arg5[%c0_13, %c0_14] : memref<16x1xf32, #tpu.memory_space<vmem>>, vector<16x1xf32>
      tpu.vector_store %arg5[%c0_13, %c0_14], %22 {strides = array<i32>} : memref<16x1xf32, #tpu.memory_space<vmem>>, vector<16x1xf32>,
    } else {
    }
    %c0 = arith.constant 0 : index
    %c0_1 = arith.constant 0 : index
    %3 = vector.load %arg2[%c0, %c0_1] : memref<16x32xf32, #tpu.memory_space<vmem>>, vector<16x32xf32>
    %4 = tpu.iota {dimensions = array<i32: 1>} : vector<16x32xi32>
    %c32_i32 = arith.constant 32 : i32
    %5 = arith.muli %arg1, %c32_i32 : i32
    %6 = vector.broadcast %5 : i32 to vector<16x32xi32>
    %7 = arith.addi %4, %6 : vector<16x32xi32>
    %c0_2 = arith.constant 0 : index
    %c0_3 = arith.constant 0 : index
    %8 = vector.load %arg3[%c0_2, %c0_3] : memref<16x1xi32, #tpu.memory_space<vmem>>, vector<16x1xi32>
    %9 = vector.broadcast %8 : vector<16x1xi32> to vector<16x32xi32>
    %10 = arith.cmpi eq, %7, %9 : vector<16x32xi32>
    %cst = arith.constant 0.000000e+00 : f32
    %11 = vector.broadcast %cst : f32 to vector<16x32xf32>
    %12 = arith.select %10, %3, %11 : vector<16x32xi1>, vector<16x32xf32>
    %cst_4 = arith.constant dense<0.000000e+00> : vector<16xf32>
    %13 = vector.multi_reduction <add>, %12, %cst_4 [1] : vector<16x32xf32> to vector<16xf32>
    %14 = vector.shape_cast %13 : vector<16xf32> to vector<16x1xf32>
    %c0_5 = arith.constant 0 : index
    %c0_6 = arith.constant 0 : index
    %15 = vector.load %arg5[%c0_5, %c0_6] : memref<16x1xf32, #tpu.memory_space<vmem>>, vector<16x1xf32>
    %cst_7 = arith.constant 0.000000e+00 : f32
    %16 = vector.broadcast %cst_7 : f32 to vector<16x1xf32>
    %17 = arith.subf %16, %14 : vector<16x1xf32>
    %c0_8 = arith.constant 0 : index
    %c0_9 = arith.constant 0 : index
    %18 = vector.load %arg4[%c0_8, %c0_9] : memref<16x1xf32, #tpu.memory_space<vmem>>, vector<16x1xf32>
    %19 = arith.mulf %17, %18 : vector<16x1xf32>
    %20 = arith.addf %15, %19 : vector<16x1xf32>
    %c0_10 = arith.constant 0 : index
    %c0_11 = arith.constant 0 : index
    %21 = vector.load %arg5[%c0_10, %c0_11] : memref<16x1xf32, #tpu.memory_space<vmem>>, vector<16x1xf32>
    tpu.vector_store %arg5[%c0_10, %c0_11], %20 {strides = array<i32>} : memref<16x1xf32, #tpu.memory_space<vmem>>, vector<16x1xf32>,
    return
  }
  func.func @transform_0(%arg0: i32, %arg1: i32) -> (i32, i32) {
    %c0_i32 = arith.constant 0 : i32
    return %arg0, %arg1 : i32, i32
  }
  func.func @transform_1(%arg0: i32, %arg1: i32) -> (i32, i32) {
    %c0_i32 = arith.constant 0 : i32
    %c0_i32_0 = arith.constant 0 : i32
    return %arg0, %c0_i32 : i32, i32
  }
  func.func @transform_2(%arg0: i32, %arg1: i32) -> (i32, i32) {
    %c0_i32 = arith.constant 0 : i32
    %c0_i32_0 = arith.constant 0 : i32
    return %arg0, %c0_i32 : i32, i32
  }
  func.func @transform_3(%arg0: i32, %arg1: i32) -> (i32, i32) {
    %c0_i32 = arith.constant 0 : i32
    %c0_i32_0 = arith.constant 0 : i32
    return %arg0, %c0_i32 : i32, i32
  }
}

</mosaic_0001>

<llo_original>
// kernel: tpu_custom_call.1
$region0: #{tpu_custom_call.1}
  #allocation0 [shape = 'u32[]', space=smem, size = 0x4, offset = 0x4, fixed_abs, tag = 'smem constant byte address 0x4 - core index']
  #allocation1 [shape = 'u32[144,128]{1,0:T(1,128)}', space=vmem, size = 0x12000, scoped, tag = 'internal scratch']
  %s0 = inlined_call_operand.vmem [shape: f32[16,32], index: 0, kind: input, shape index: {}]
  %s1 = inlined_call_operand.vmem [shape: s32[16,1], index: 1, kind: input, shape index: {}]
  %s2 = inlined_call_operand.vmem [shape: f32[16,1], index: 2, kind: input, shape index: {}]
  %s3 = inlined_call_operand.vmem [shape: f32[16,1], index: 3, kind: output, shape index: {}]
  %s4 = sld [smem:[#allocation0]]
  $region26: #{tpu_custom_call.1} parent=0
    _
  %s6 = ssub.s32 1, %s4
  %s7 = scalar_select 0, %s6, %s4
  // Predicated region
  $region2: #{tpu_custom_call.1} parent=0 // pred_check
    _
  $region3: #{tpu_custom_call.1} parent=0 // pred_check_branch
    %9 = sbr.rel (0) target = $region5
  $region4: #{tpu_custom_call.1} parent=0 // pred_region
    _
  $region5: #{tpu_custom_call.1} parent=0 // pred_fallthru
    _
  // Predicated region
  $region6: #{tpu_custom_call.1} parent=0 // pred_check
    _
  $region7: #{tpu_custom_call.1} parent=0 // pred_check_branch
    %11 = sbr.rel (0) target = $region9
  $region8: #{tpu_custom_call.1} parent=0 // pred_region
    _
  $region9: #{tpu_custom_call.1} parent=0 // pred_fallthru
    _
  // Predicated region
  $region10: #{tpu_custom_call.1} parent=0 // pred_check
    _
  $region11: #{tpu_custom_call.1} parent=0 // pred_check_branch
    %13 = sbr.rel (0) target = $region13
  $region12: #{tpu_custom_call.1} parent=0 // pred_region
    _
  $region13: #{tpu_custom_call.1} parent=0 // pred_fallthru
    _
  %p14 = scmp.eq.s32.totalorder 0, 0
  // Predicated region
  $region14: #{tpu_custom_call.1} parent=0 // pred_check
    %p15 = pneg %p14
  $region15: #{tpu_custom_call.1} parent=0 // pred_check_branch
    %17 = sbr.rel (%p15) target = $region17
  $region16: #{tpu_custom_call.1} parent=0 // pred_region
    %vm18 = vcmask 7168
    %19 = vst.msk [vmem:[%s3] sm:$0xff] %vm18, 0.0
    %20 = vst.msk [vmem:[%s3 + $0x8] sm:$0xff] %vm18, 0.0
  $region17: #{tpu_custom_call.1} parent=0 // pred_fallthru
    _
  %v21 = vld [vmem:[%s0] sm:$0xff]
  %v22 = vld [vmem:[%s0 + $0x8] sm:$0xff]
  %v23 = vlaneseq
  %v24 = vand.u32 %v23, 127
  %s25 = smul.u32 0, 32
  %v26 = vstv %s25
  %v27 = vadd.s32 %v24, %v26
  %v28 = vld [vmem:[%s1] sm:$0xff]
  %v29 = vld [vmem:[%s1 + $0x8] sm:$0xff]
  %30 = vset.pattern.permute.xlu0 0
  %31 = vperm.xlu0 %30, %v28
  %v32 = vpop.permute.xlu0 %31
  %33 = vset.pattern.permute.xlu0 0
  %34 = vperm.xlu0 %33, %v29
  %v35 = vpop.permute.xlu0 %34
  %vm36 = vcmp.eq.s32.totalorder %v27, %v32
  %vm37 = vcmp.eq.s32.totalorder %v27, %v35
  %v38 = vsel %vm36, %v21, 0.0
  %v39 = vsel %vm37, %v22, 0.0
  %vm40 = vcmask 261120
  %v41 = vsel %vm40, %v38, 0.0
  %42 = vadd.xlane.f32.xlu0 %v41
  %v43 = vpop.xlane.xlu0 %42
  %v44 = vsel %vm40, %v39, 0.0
  %45 = vadd.xlane.f32.xlu0 %v44
  %v46 = vpop.xlane.xlu0 %45
  %v47 = vld [vmem:[%s3] sm:$0xff]
  %v48 = vld [vmem:[%s3 + $0x8] sm:$0xff]
  %v49 = vsub.f32 0.0, %v43
  %v50 = vsub.f32 0.0, %v46
  %v51 = vld [vmem:[%s2] sm:$0xff]
  %v52 = vld [vmem:[%s2 + $0x8] sm:$0xff]
  %v53 = vmul.f32 %v49, %v51
  %v54 = vmul.f32 %v50, %v52
  %v55 = vadd.f32 %v47, %v53
  %v56 = vadd.f32 %v48, %v54
  %vm57 = vcmask 7168
  %58 = vst.msk [vmem:[%s3] sm:$0xff] %vm57, %v55
  %59 = vst.msk [vmem:[%s3 + $0x8] sm:$0xff] %vm57, %v56
  // Predicated region
  $region18: #{tpu_custom_call.1} parent=0 // pred_check
    _
  $region19: #{tpu_custom_call.1} parent=0 // pred_check_branch
    %61 = sbr.rel (0) target = $region21
  $region20: #{tpu_custom_call.1} parent=0 // pred_region
    _
  $region21: #{tpu_custom_call.1} parent=0 // pred_fallthru
    _
  // Predicated region
  $region22: #{tpu_custom_call.1} parent=0 // pred_check
    _
  $region23: #{tpu_custom_call.1} parent=0 // pred_check_branch
    %63 = sbr.rel (0) target = $region25
  $region24: #{tpu_custom_call.1} parent=0 // pred_region
    _
  $region25: #{tpu_custom_call.1} parent=0 // pred_fallthru
    _

</llo_original>
